<compile_context>
chip_gen: v6e
topology: v6e:2x2x1
jax: 0.10.0
libtpu: 0.0.40
codegen_flags: <defaults>
</compile_context>

<pallas_src>
import jax
import jax.numpy as jnp
from jax import lax
from jax.experimental import pallas as pl
from jax.experimental.pallas import tpu as pltpu


# --------------------------------------------------------------------------
# Shared gate (bottleneck MLP + sigmoid) on a (Bt, C) channel vector.
# --------------------------------------------------------------------------
def _gate(y, w1, b1, w2, b2):
    """y: (Bt, C) f32 -> sigmoid(relu(y @ w1.T + b1) @ w2.T + b2): (Bt, C) f32."""
    w1 = w1.astype(jnp.float32)
    b1 = b1.astype(jnp.float32)
    w2 = w2.astype(jnp.float32)
    b2 = b2.astype(jnp.float32)
    C = w1.shape[1]
    if C >= 256:
        # Larger channel counts: one MXU matmul on the otherwise-idle
        # vector-extended slot beats a (Bt, Cr, C) broadcast + XLU reduce.
        z = lax.dot_general(y, w1, (((1,), (1,)), ((), ())),
                            preferred_element_type=jnp.float32) + b1
        z = jnp.maximum(z, 0.0)
        s = lax.dot_general(z, w2, (((1,), (1,)), ((), ())),
                            preferred_element_type=jnp.float32) + b2
    else:
        # Tiny dims (e.g. C=32, Cr=2): keep it on the VPU; MXU would add latency.
        z = jnp.sum(y[:, None, :] * w1[None, :, :], axis=-1) + b1
        z = jnp.maximum(z, 0.0)
        s = jnp.sum(z[:, None, :] * w2[None, :, :], axis=-1) + b2
    return jax.nn.sigmoid(s)


# --------------------------------------------------------------------------
# Fused path: the whole (bt, C, HW) slab is resident in VMEM.
# --------------------------------------------------------------------------
def _cca_fused_kernel(x_ref, w1_ref, b1_ref, w2_ref, b2_ref, o_ref):
    xf = x_ref[...].astype(jnp.float32)                         # (Bt, C, HW)
    inv_hw = 1.0 / float(xf.shape[-1])

    # Two-pass statistics: numerically safe (no E[x^2]-mean^2 cancellation).
    mean = jnp.sum(xf, axis=-1, keepdims=True) * inv_hw         # (Bt, C, 1)
    d = xf - mean
    var = jnp.sum(d * d, axis=-1, keepdims=True) * inv_hw       # (Bt, C, 1)
    y = (jnp.sqrt(var) + mean)[..., 0]                          # (Bt, C)  std + mean

    s = _gate(y, w1_ref[...], b1_ref[...], w2_ref[...], b2_ref[...])   # (Bt, C) f32

    # Re-read x for the final scale instead of keeping the f32 up-cast alive:
    # vld slots have slack in this HBM-bound regime, and dropping the temp
    # frees block-sized VMEM (largest payoff on v7x's 64 MiB).  The multiply
    # stays in the native dtype (bf16 inputs -> bf16 multiply).
    o_ref[...] = x_ref[...] * s.astype(o_ref.dtype)[:, :, None]


def _cca_fused(x, w1, b1r, w2, b2r, bt, vmem_limit):
    B, C, H, W = x.shape
    HW = H * W
    Cr = w1.shape[0]
    xf = x.reshape(B, C, HW)                     # lane-dense last dim, no in-kernel reshape
    nsteps = B // bt

    x_index = lambda b: (b, 0, 0)
    x_block_bytes = bt * C * HW * x.dtype.itemsize
    if x_block_bytes < (1 << 20) and nsteps >= 4:
        # Small blocks expose per-step DMA latency; deepen input buffering.
        x_spec = pl.BlockSpec((bt, C, HW), x_index, pipeline_mode=pl.Buffered(3))
    else:
        x_spec = pl.BlockSpec((bt, C, HW), x_index)

    out = pl.pallas_call(
        _cca_fused_kernel,
        out_shape=jax.ShapeDtypeStruct((B, C, HW), x.dtype),
        grid_spec=pltpu.PrefetchScalarGridSpec(
            num_scalar_prefetch=0,
            grid=(nsteps,),
            in_specs=[
                x_spec,
                pl.BlockSpec((Cr, C), lambda b: (0, 0)),
                pl.BlockSpec((1, Cr), lambda b: (0, 0)),
                pl.BlockSpec((C, Cr), lambda b: (0, 0)),
                pl.BlockSpec((1, C), lambda b: (0, 0)),
            ],
            out_specs=pl.BlockSpec((bt, C, HW), x_index),
        ),
        compiler_params=pltpu.CompilerParams(
            dimension_semantics=("parallel",),
            vmem_limit_bytes=int(vmem_limit),
        ),
    )(xf, w1, b1r, w2, b2r)
    return out.reshape(B, C, H, W)


# --------------------------------------------------------------------------
# Chunked fallback: tile the HW axis when one batch row does not fit in VMEM.
#   Kernel A: two passes over HW chunks (mean, then centered variance) and
#             the per-channel gate, written as a (B, C, 1) array.
#   Kernel B: gated elementwise scale over HW chunks.
# --------------------------------------------------------------------------
def _cca_chunked(x, w1, b1r, w2, b2r, hw_chunk, vmem_limit):
    B, C, H, W = x.shape
    HW = H * W
    assert HW % hw_chunk == 0, "hw_chunk must divide H*W"
    n_chunks = HW // hw_chunk
    Cr = w1.shape[0]
    xf = x.reshape(B, C, HW)
    inv_hw = 1.0 / float(HW)

    def stats_gate_kernel(x_ref, w1_ref, b1_ref, w2_ref, b2_ref, g_ref,
                          acc, mean_sc):
        k = pl.program_id(1)
        phase = k // n_chunks          # 0: mean pass, 1: centered-variance pass
        step = k % n_chunks
        xc = x_ref[...].astype(jnp.float32)          # (1, C, hw_chunk)

        @pl.when(step == 0)
        def _():
            acc[...] = jnp.zeros_like(acc)

        @pl.when(phase == 0)
        def _():
            acc[...] += jnp.sum(xc, axis=-1, keepdims=True)

        @pl.when(jnp.logical_and(phase == 0, step == n_chunks - 1))
        def _():
            mean_sc[...] = acc[...] * inv_hw                     # (1, C, 1)

        @pl.when(phase == 1)
        def _():
            d = xc - mean_sc[...]
            acc[...] += jnp.sum(d * d, axis=-1, keepdims=True)

        @pl.when(jnp.logical_and(phase == 1, step == n_chunks - 1))
        def _():
            std = jnp.sqrt(acc[...] * inv_hw)                    # (1, C, 1)
            y = (std + mean_sc[...])[:, :, 0]                    # (1, C)
            g = _gate(y, w1_ref[...], b1_ref[...], w2_ref[...], b2_ref[...])
            g_ref[...] = g[:, :, None]                           # (1, C, 1)

    gate = pl.pallas_call(
        stats_gate_kernel,
        out_shape=jax.ShapeDtypeStruct((B, C, 1), jnp.float32),
        grid_spec=pltpu.PrefetchScalarGridSpec(
            num_scalar_prefetch=0,
            grid=(B, 2 * n_chunks),
            in_specs=[
                pl.BlockSpec((1, C, hw_chunk), lambda b, k: (b, 0, k % n_chunks)),
                pl.BlockSpec((Cr, C), lambda b, k: (0, 0)),
                pl.BlockSpec((1, Cr), lambda b, k: (0, 0)),
                pl.BlockSpec((C, Cr), lambda b, k: (0, 0)),
                pl.BlockSpec((1, C), lambda b, k: (0, 0)),
            ],
            out_specs=pl.BlockSpec((1, C, 1), lambda b, k: (b, 0, 0)),
            scratch_shapes=[pltpu.VMEM((1, C, 1), jnp.float32),
                            pltpu.VMEM((1, C, 1), jnp.float32)],
        ),
        compiler_params=pltpu.CompilerParams(
            dimension_semantics=("parallel", "arbitrary"),
            vmem_limit_bytes=int(vmem_limit),
        ),
    )(xf, w1, b1r, w2, b2r)

    def scale_kernel(g_ref, x_ref, o_ref):
        # (1, C, 1) gate broadcast against the (1, C, hw_chunk) tile; multiply
        # in the native dtype.
        o_ref[...] = x_ref[...] * g_ref[...].astype(o_ref.dtype)

    out = pl.pallas_call(
        scale_kernel,
        out_shape=jax.ShapeDtypeStruct((B, C, HW), x.dtype),
        grid_spec=pltpu.PrefetchScalarGridSpec(
            num_scalar_prefetch=0,
            grid=(B, n_chunks),
            in_specs=[
                pl.BlockSpec((1, C, 1), lambda b, k: (b, 0, 0)),
                pl.BlockSpec((1, C, hw_chunk), lambda b, k: (b, 0, k)),
            ],
            out_specs=pl.BlockSpec((1, C, hw_chunk), lambda b, k: (b, 0, k)),
        ),
        compiler_params=pltpu.CompilerParams(
            dimension_semantics=("parallel", "arbitrary"),
            vmem_limit_bytes=int(vmem_limit),
        ),
    )(gate, xf)
    return out.reshape(B, C, H, W)


# --------------------------------------------------------------------------
# Wrapper: device-aware tiling / VMEM budgeting and path selection.
# --------------------------------------------------------------------------
def _device_info():
    try:
        kind = jax.devices()[0].device_kind.lower()
    except Exception:
        kind = ""
    two_tc = "v7" in kind                                   # 2 TensorCores on v7x
    if "v7" in kind:
        vmem_cap = 64 << 20
    elif kind:
        vmem_cap = 128 << 20                                # v4/v5e/v6e
    else:
        vmem_cap = 64 << 20                                 # unknown: be conservative
    return two_tc, vmem_cap


def _choose_batch_tile(B, per_b_block, per_b_foot, budget, two_tc):
    target_block = 8 << 20                # ~8 MiB blocks: >=85% of HBM roofline
    max_bt = max(1, min(target_block // max(per_b_block, 1),
                        budget // max(per_b_foot, 1)))
    if two_tc and B >= 2:
        # v7x: keep >=2 grid steps so the parallel batch axis shards across
        # both TensorCores — but never shrink blocks below ~4 MiB to do so.
        cap = B // 2
        if cap * per_b_block >= (4 << 20):
            max_bt = min(max_bt, cap)
    bt = 1
    for d in range(1, B + 1):
        if B % d == 0 and d <= max_bt:
            bt = d
    return bt


def cca_layer(x, w1, b1, w2, b2):
    B, C, H, W = x.shape
    Cr = w1.shape[0]
    HW = H * W
    b1r = jnp.asarray(b1).reshape(1, Cr)
    b2r = jnp.asarray(b2).reshape(1, C)

    two_tc, vmem_cap = _device_info()
    itemsize = x.dtype.itemsize
    budget = int(0.6 * vmem_cap)          # headroom for weights / compiler scratch

    # Footprint per batch row in the fused kernel: 2x-in + 2x-out double
    # buffers at the native dtype plus ~3 block-sized f32 temporaries.
    per_b_block = C * HW * itemsize
    per_b_foot = C * HW * (4 * itemsize + 3 * 4)

    if per_b_foot <= budget:
        bt = _choose_batch_tile(B, per_b_block, per_b_foot, budget, two_tc)
        footprint = bt * per_b_foot + (2 << 20)
        vmem_limit = min(int(0.85 * vmem_cap), max(footprint, 32 << 20))
        return _cca_fused(x, w1, b1r, w2, b2r, bt, vmem_limit)

    # Large feature map: even one batch row does not fit — chunk the HW axis.
    if HW % 128 == 0:
        per_elem = C * (4 * itemsize + 3 * 4)
        max_chunk = max(128, budget // max(per_elem, 1))
        hw_chunk = 128
        for c in range(128, HW, 128):
            if HW % c == 0 and c <= max_chunk:
                hw_chunk = c
        footprint = C * hw_chunk * (4 * itemsize + 3 * 4) + (2 << 20)
        vmem_limit = min(int(0.85 * vmem_cap), max(footprint, 32 << 20))
        return _cca_chunked(x, w1, b1r, w2, b2r, hw_chunk, vmem_limit)

    # TODO(synk): H*W not a multiple of 128 and too large for VMEM — fall back
    # to a single full-slab block and let Mosaic try (may fail at extreme sizes).
    return _cca_fused(x, w1, b1r, w2, b2r, 1,
                      min(int(0.9 * vmem_cap), per_b_foot + (4 << 20)))


# --------------------------------------------------------------------------
# Pure-JAX reference mirroring the PyTorch CCALayer semantics.
# --------------------------------------------------------------------------
def cca_reference(x, w1, b1, w2, b2):
    B, C, H, W = x.shape
    xf = x.reshape(B, C, H * W).astype(jnp.float32)
    mean = jnp.mean(xf, axis=2, keepdims=True)
    var = jnp.mean((xf - mean) ** 2, axis=2, keepdims=True)
    y = (jnp.sqrt(var) + mean)[..., 0]                       # (B, C)
    z = jnp.maximum(y @ w1.T + b1.reshape(-1), 0.0)          # (B, Cr)
    s = jax.nn.sigmoid(z @ w2.T + b2.reshape(-1))            # (B, C)
    return (x.astype(jnp.float32) * s[:, :, None, None]).astype(x.dtype)


if __name__ == "__main__":
    B, C, H, W = 2, 32, 16, 16
    reduction = 16
    Cr = C // reduction

    key = jax.random.PRNGKey(0)
    kx, k1, k2, k3, k4 = jax.random.split(key, 5)

    x = jax.random.normal(kx, (B, C, H, W), dtype=jnp.float32)
    # Conv2d(C, Cr, 1): weight (Cr, C, 1, 1) squeezed to (Cr, C); bias (Cr,)
    w1 = jax.random.normal(k1, (Cr, C), dtype=jnp.float32) * 0.1
    b1 = jax.random.normal(k2, (Cr,), dtype=jnp.float32) * 0.1
    # Conv2d(Cr, C, 1): weight (C, Cr); bias (C,)
    w2 = jax.random.normal(k3, (C, Cr), dtype=jnp.float32) * 0.1
    b2 = jax.random.normal(k4, (C,), dtype=jnp.float32) * 0.1

    ref = cca_reference(x, w1, b1, w2, b2)

    # Main (fused) path.
    out = jax.block_until_ready(cca_layer(x, w1, b1, w2, b2))
    assert jnp.allclose(out, ref, atol=1e-5, rtol=1e-5), "fused path mismatch"

    # Also exercise the spatially-chunked fallback path on the same data.
    out_chunked = jax.block_until_ready(
        _cca_chunked(x, w1, b1.reshape(1, Cr), w2, b2.reshape(1, C),
                     hw_chunk=128, vmem_limit=32 << 20))
    assert jnp.allclose(out_chunked, ref, atol=1e-5, rtol=1e-5), "chunked path mismatch"

    print("KERNEL_OK")
</pallas_src>

<mosaic_0001>
module attributes {stable_mosaic.version = 11 : i64} {
  func.func @_cca_fused_kernel(%arg0: i32, %arg1: memref<2x32x256xf32, #tpu.memory_space<vmem>>, %arg2: memref<2x32xf32, #tpu.memory_space<vmem>>, %arg3: memref<1x2xf32, #tpu.memory_space<vmem>>, %arg4: memref<32x2xf32, #tpu.memory_space<vmem>>, %arg5: memref<1x32xf32, #tpu.memory_space<vmem>>, %arg6: memref<2x32x256xf32, #tpu.memory_space<vmem>>) attributes {dimension_semantics = [#tpu.dimension_semantics<parallel>], iteration_bounds = array<i64: 1>, scalar_prefetch = 0 : i64, scratch_operands = 0 : i64, tpu.core_type = #tpu.core_type<tc>, window_params = [{transform_indices = @transform_0, window_bounds = array<i64: 2, 32, 256>}, {pipeline_mode = #tpu.pipeline_mode<synchronous>, transform_indices = @transform_1, window_bounds = array<i64: 2, 32>}, {pipeline_mode = #tpu.pipeline_mode<synchronous>, transform_indices = @transform_2, window_bounds = array<i64: 1, 2>}, {pipeline_mode = #tpu.pipeline_mode<synchronous>, transform_indices = @transform_3, window_bounds = array<i64: 32, 2>}, {pipeline_mode = #tpu.pipeline_mode<synchronous>, transform_indices = @transform_4, window_bounds = array<i64: 1, 32>}, {transform_indices = @transform_5, window_bounds = array<i64: 2, 32, 256>}]} {
    %c0 = arith.constant 0 : index
    %c0_0 = arith.constant 0 : index
    %c0_1 = arith.constant 0 : index
    %0 = vector.load %arg1[%c0, %c0_0, %c0_1] : memref<2x32x256xf32, #tpu.memory_space<vmem>>, vector<2x32x256xf32>
    %cst = arith.constant dense<0.000000e+00> : vector<2x32xf32>
    %1 = vector.multi_reduction <add>, %0, %cst [2] : vector<2x32x256xf32> to vector<2x32xf32>
    %2 = vector.shape_cast %1 : vector<2x32xf32> to vector<2x32x1xf32>
    %cst_2 = arith.constant 3.906250e-03 : f32
    %3 = vector.broadcast %cst_2 : f32 to vector<2x32x1xf32>
    %4 = arith.mulf %2, %3 : vector<2x32x1xf32>
    %5 = vector.broadcast %4 : vector<2x32x1xf32> to vector<2x32x256xf32>
    %6 = arith.subf %0, %5 : vector<2x32x256xf32>
    %7 = arith.mulf %6, %6 : vector<2x32x256xf32>
    %cst_3 = arith.constant dense<0.000000e+00> : vector<2x32xf32>
    %8 = vector.multi_reduction <add>, %7, %cst_3 [2] : vector<2x32x256xf32> to vector<2x32xf32>
    %9 = vector.shape_cast %8 : vector<2x32xf32> to vector<2x32x1xf32>
    %cst_4 = arith.constant 3.906250e-03 : f32
    %10 = vector.broadcast %cst_4 : f32 to vector<2x32x1xf32>
    %11 = arith.mulf %9, %10 : vector<2x32x1xf32>
    %12 = math.sqrt %11 : vector<2x32x1xf32>
    %13 = arith.addf %12, %4 : vector<2x32x1xf32>
    %14 = vector.shape_cast %13 : vector<2x32x1xf32> to vector<2x32xf32>
    %c0_5 = arith.constant 0 : index
    %c0_6 = arith.constant 0 : index
    %15 = vector.load %arg2[%c0_5, %c0_6] : memref<2x32xf32, #tpu.memory_space<vmem>>, vector<2x32xf32>
    %c0_7 = arith.constant 0 : index
    %c0_8 = arith.constant 0 : index
    %16 = vector.load %arg3[%c0_7, %c0_8] : memref<1x2xf32, #tpu.memory_space<vmem>>, vector<1x2xf32>
    %c0_9 = arith.constant 0 : index
    %c0_10 = arith.constant 0 : index
    %17 = vector.load %arg4[%c0_9, %c0_10] : memref<32x2xf32, #tpu.memory_space<vmem>>, vector<32x2xf32>
    %c0_11 = arith.constant 0 : index
    %c0_12 = arith.constant 0 : index
    %18 = vector.load %arg5[%c0_11, %c0_12] : memref<1x32xf32, #tpu.memory_space<vmem>>, vector<1x32xf32>
    %19 = vector.shape_cast %14 : vector<2x32xf32> to vector<2x1x32xf32>
    %20 = vector.shape_cast %15 : vector<2x32xf32> to vector<1x2x32xf32>
    %21 = vector.broadcast %19 : vector<2x1x32xf32> to vector<2x2x32xf32>
    %22 = vector.broadcast %20 : vector<1x2x32xf32> to vector<2x2x32xf32>
    %23 = arith.mulf %21, %22 : vector<2x2x32xf32>
    %cst_13 = arith.constant dense<0.000000e+00> : vector<2x2xf32>
    %24 = vector.multi_reduction <add>, %23, %cst_13 [2] : vector<2x2x32xf32> to vector<2x2xf32>
    %25 = vector.broadcast %16 : vector<1x2xf32> to vector<2x2xf32>
    %26 = arith.addf %24, %25 : vector<2x2xf32>
    %cst_14 = arith.constant 0.000000e+00 : f32
    %27 = vector.broadcast %cst_14 : f32 to vector<2x2xf32>
    %28 = arith.maximumf %26, %27 : vector<2x2xf32>
    %29 = vector.shape_cast %28 : vector<2x2xf32> to vector<2x1x2xf32>
    %30 = vector.shape_cast %17 : vector<32x2xf32> to vector<1x32x2xf32>
    %31 = vector.broadcast %29 : vector<2x1x2xf32> to vector<2x32x2xf32>
    %32 = vector.broadcast %30 : vector<1x32x2xf32> to vector<2x32x2xf32>
    %33 = arith.mulf %31, %32 : vector<2x32x2xf32>
    %cst_15 = arith.constant dense<0.000000e+00> : vector<2x32xf32>
    %34 = vector.multi_reduction <add>, %33, %cst_15 [2] : vector<2x32x2xf32> to vector<2x32xf32>
    %35 = vector.broadcast %18 : vector<1x32xf32> to vector<2x32xf32>
    %36 = arith.addf %34, %35 : vector<2x32xf32>
    %37 = arith.negf %36 : vector<2x32xf32>
    %38 = math.exp %37 : vector<2x32xf32>
    %cst_16 = arith.constant 1.000000e+00 : f32
    %39 = vector.broadcast %cst_16 : f32 to vector<2x32xf32>
    %40 = arith.addf %39, %38 : vector<2x32xf32>
    %41 = arith.divf %39, %40 : vector<2x32xf32>
    %c0_17 = arith.constant 0 : index
    %c0_18 = arith.constant 0 : index
    %c0_19 = arith.constant 0 : index
    %42 = vector.load %arg1[%c0_17, %c0_18, %c0_19] : memref<2x32x256xf32, #tpu.memory_space<vmem>>, vector<2x32x256xf32>
    %43 = vector.shape_cast %41 : vector<2x32xf32> to vector<2x32x1xf32>
    %44 = vector.broadcast %43 : vector<2x32x1xf32> to vector<2x32x256xf32>
    %45 = arith.mulf %42, %44 : vector<2x32x256xf32>
    %c0_20 = arith.constant 0 : index
    %c0_21 = arith.constant 0 : index
    %c0_22 = arith.constant 0 : index
    %46 = vector.load %arg6[%c0_20, %c0_21, %c0_22] : memref<2x32x256xf32, #tpu.memory_space<vmem>>, vector<2x32x256xf32>
    tpu.vector_store %arg6[%c0_20, %c0_21, %c0_22], %45 {strides = array<i32>} : memref<2x32x256xf32, #tpu.memory_space<vmem>>, vector<2x32x256xf32>,
    return
  }
  func.func @transform_0(%arg0: i32) -> (i32, i32, i32) {
    %c0_i32 = arith.constant 0 : i32
    %c0_i32_0 = arith.constant 0 : i32
    %c0_i32_1 = arith.constant 0 : i32
    return %arg0, %c0_i32, %c0_i32_0 : i32, i32, i32
  }
  func.func @transform_1(%arg0: i32) -> (i32, i32) {
    %c0_i32 = arith.constant 0 : i32
    %c0_i32_0 = arith.constant 0 : i32
    %c0_i32_1 = arith.constant 0 : i32
    return %c0_i32, %c0_i32_0 : i32, i32
  }
  func.func @transform_2(%arg0: i32) -> (i32, i32) {
    %c0_i32 = arith.constant 0 : i32
    %c0_i32_0 = arith.constant 0 : i32
    %c0_i32_1 = arith.constant 0 : i32
    return %c0_i32, %c0_i32_0 : i32, i32
  }
  func.func @transform_3(%arg0: i32) -> (i32, i32) {
    %c0_i32 = arith.constant 0 : i32
    %c0_i32_0 = arith.constant 0 : i32
    %c0_i32_1 = arith.constant 0 : i32
    return %c0_i32, %c0_i32_0 : i32, i32
  }
  func.func @transform_4(%arg0: i32) -> (i32, i32) {
    %c0_i32 = arith.constant 0 : i32
    %c0_i32_0 = arith.constant 0 : i32
    %c0_i32_1 = arith.constant 0 : i32
    return %c0_i32, %c0_i32_0 : i32, i32
  }
  func.func @transform_5(%arg0: i32) -> (i32, i32, i32) {
    %c0_i32 = arith.constant 0 : i32
    %c0_i32_0 = arith.constant 0 : i32
    %c0_i32_1 = arith.constant 0 : i32
    return %arg0, %c0_i32, %c0_i32_0 : i32, i32, i32
  }
}

</mosaic_0001>

<llo_original>
// kernel: tpu_custom_call.1
$region0: #{tpu_custom_call.1}
  #allocation0 [shape = 'u32[]', space=smem, size = 0x4, offset = 0x4, fixed_abs, tag = 'smem constant byte address 0x4 - core index']
  #allocation1 [shape = 'u32[144,128]{1,0:T(1,128)}', space=vmem, size = 0x12000, scoped, tag = 'internal scratch']
  %s0 = inlined_call_operand.hbm [shape: f32[2,32,256], index: 0, kind: input, shape index: {}]
  %s1 = inlined_call_operand.vmem [shape: f32[2,32], index: 1, kind: input, shape index: {}]
  %s2 = inlined_call_operand.vmem [shape: f32[1,2], index: 2, kind: input, shape index: {}]
  %s3 = inlined_call_operand.vmem [shape: f32[32,2], index: 3, kind: input, shape index: {}]
  %s4 = inlined_call_operand.vmem [shape: f32[1,32], index: 4, kind: input, shape index: {}]
  %s5 = inlined_call_operand.hbm [shape: f32[2,32,256], index: 5, kind: output, shape index: {}]
  %s6 = sld [smem:[#allocation0]]
  $region34: #{tpu_custom_call.1} parent=0
    _
  %s8 = ssub.s32 1, %s6
  %s9 = scalar_select 0, %s8, %s6
  $region1: #{tpu_custom_call.1} parent=0
    #allocation2 [shape = 'u8[65536]{0}', space=vmem, size = 0x10000, scoped, tag = 'input window, operand 0, single buffered']
    #allocation3 [shape = 's32[1]{0}', space=sflag, size = 0x4, scoped, tag = 'scoped memory for tpu_custom_call.1']
    #allocation4 [shape = 's32[1]{0}', space=sflag, size = 0x4, scoped, tag = 'scoped memory for tpu_custom_call.1']
    #allocation5 [shape = 'u8[65536]{0}', space=vmem, size = 0x10000, scoped, tag = 'output window, operand 0, single buffered']
    %10 = vsyncpa [#allocation3], 0
    %11 = vsyncpa [#allocation4], 0
    // Predicated region
    $region2: #{tpu_custom_call.1} parent=1 // pred_check
      _
    $region3: #{tpu_custom_call.1} parent=1 // pred_check_branch
      %13 = sbr.rel (0) target = $region5
    $region4: #{tpu_custom_call.1} parent=1 // pred_region
      %s15 = ssub.s32 2048, 2048
      %16 = vsyncadd [#allocation3], %s15
      %s17 = sshll.u32 [#allocation2], 4
      %s18 = int_to_ptr.vmem [resolvable:$true] %s17
      %23 = dma.hbm_to_vmem [thread:$0]  %s0, 2048, %s18, [#allocation3], 256, 256, 16
    $region5: #{tpu_custom_call.1} parent=1 // pred_fallthru
      _
    // Predicated region
    $region6: #{tpu_custom_call.1} parent=1 // pred_check
      _
    $region7: #{tpu_custom_call.1} parent=1 // pred_check_branch
      %25 = sbr.rel (0) target = $region9
    $region8: #{tpu_custom_call.1} parent=1 // pred_region
      _
    $region9: #{tpu_custom_call.1} parent=1 // pred_fallthru
      _
    // Predicated region
    $region10: #{tpu_custom_call.1} parent=1 // pred_check
      _
    $region11: #{tpu_custom_call.1} parent=1 // pred_check_branch
      %27 = sbr.rel (0) target = $region13
    $region12: #{tpu_custom_call.1} parent=1 // pred_region
      _
    $region13: #{tpu_custom_call.1} parent=1 // pred_fallthru
      _
    // Predicated region
    $region14: #{tpu_custom_call.1} parent=1 // pred_check
      _
    $region15: #{tpu_custom_call.1} parent=1 // pred_check_branch
      %29 = sbr.rel (0) target = $region17
    $region16: #{tpu_custom_call.1} parent=1 // pred_region
      _
    $region17: #{tpu_custom_call.1} parent=1 // pred_fallthru
      _
    // Predicated region
    $region18: #{tpu_custom_call.1} parent=1 // pred_check
      _
    $region19: #{tpu_custom_call.1} parent=1 // pred_check_branch
      %31 = sbr.rel (0) target = $region21
    $region20: #{tpu_custom_call.1} parent=1 // pred_region
      _
    $region21: #{tpu_custom_call.1} parent=1 // pred_fallthru
      _
    // Predicated region
    $region22: #{tpu_custom_call.1} parent=1 // pred_check
      _
    $region23: #{tpu_custom_call.1} parent=1 // pred_check_branch
      %33 = sbr.rel (0) target = $region25
    $region24: #{tpu_custom_call.1} parent=1 // pred_region
      %34 = dma.done [#allocation3], 2048
    $region25: #{tpu_custom_call.1} parent=1 // pred_fallthru
      _
    %v35 = vld [vmem:[#allocation2] sm:$0xff]
    %v36 = vld [vmem:[#allocation2 + $0x8] sm:$0xff]
    %v37 = vld [vmem:[#allocation2 + $0x10] sm:$0xff]
    %v38 = vld [vmem:[#allocation2 + $0x18] sm:$0xff]
    %v39 = vld [vmem:[#allocation2 + $0x20] sm:$0xff]
    %v40 = vld [vmem:[#allocation2 + $0x28] sm:$0xff]
    %v41 = vld [vmem:[#allocation2 + $0x30] sm:$0xff]
    %v42 = vld [vmem:[#allocation2 + $0x38] sm:$0xff]
    %v43 = vld [vmem:[#allocation2 + $0x40] sm:$0xff]
    %v44 = vld [vmem:[#allocation2 + $0x48] sm:$0xff]
    %v45 = vld [vmem:[#allocation2 + $0x50] sm:$0xff]
    %v46 = vld [vmem:[#allocation2 + $0x58] sm:$0xff]
    %v47 = vld [vmem:[#allocation2 + $0x60] sm:$0xff]
    %v48 = vld [vmem:[#allocation2 + $0x68] sm:$0xff]
    %v49 = vld [vmem:[#allocation2 + $0x70] sm:$0xff]
    %v50 = vld [vmem:[#allocation2 + $0x78] sm:$0xff]
    %v51 = vadd.f32 %v35, %v36
    %52 = vadd.xlane.f32.xlu0 %v51
    %v53 = vpop.xlane.xlu0 %52
    %v54 = vadd.f32 %v37, %v38
    %55 = vadd.xlane.f32.xlu0 %v54
    %v56 = vpop.xlane.xlu0 %55
    %v57 = vadd.f32 %v39, %v40
    %58 = vadd.xlane.f32.xlu0 %v57
    %v59 = vpop.xlane.xlu0 %58
    %v60 = vadd.f32 %v41, %v42
    %61 = vadd.xlane.f32.xlu0 %v60
    %v62 = vpop.xlane.xlu0 %61
    %v63 = vadd.f32 %v43, %v44
    %64 = vadd.xlane.f32.xlu0 %v63
    %v65 = vpop.xlane.xlu0 %64
    %v66 = vadd.f32 %v45, %v46
    %67 = vadd.xlane.f32.xlu0 %v66
    %v68 = vpop.xlane.xlu0 %67
    %v69 = vadd.f32 %v47, %v48
    %70 = vadd.xlane.f32.xlu0 %v69
    %v71 = vpop.xlane.xlu0 %70
    %v72 = vadd.f32 %v49, %v50
    %73 = vadd.xlane.f32.xlu0 %v72
    %v74 = vpop.xlane.xlu0 %73
    %v75 = vmul.f32 %v53, 0.00390625
    %v76 = vmul.f32 %v56, 0.00390625
    %v77 = vmul.f32 %v59, 0.00390625
    %v78 = vmul.f32 %v62, 0.00390625
    %v79 = vmul.f32 %v65, 0.00390625
    %v80 = vmul.f32 %v68, 0.00390625
    %v81 = vmul.f32 %v71, 0.00390625
    %v82 = vmul.f32 %v74, 0.00390625
    %v83 = vsub.f32 %v35, %v75
    %v84 = vsub.f32 %v36, %v75
    %v85 = vsub.f32 %v37, %v76
    %v86 = vsub.f32 %v38, %v76
    %v87 = vsub.f32 %v39, %v77
    %v88 = vsub.f32 %v40, %v77
    %v89 = vsub.f32 %v41, %v78
    %v90 = vsub.f32 %v42, %v78
    %v91 = vsub.f32 %v43, %v79
    %v92 = vsub.f32 %v44, %v79
    %v93 = vsub.f32 %v45, %v80
    %v94 = vsub.f32 %v46, %v80
    %v95 = vsub.f32 %v47, %v81
    %v96 = vsub.f32 %v48, %v81
    %v97 = vsub.f32 %v49, %v82
    %v98 = vsub.f32 %v50, %v82
    %v99 = vmul.f32 %v83, %v83
    %v100 = vmul.f32 %v84, %v84
    %v101 = vmul.f32 %v85, %v85
    %v102 = vmul.f32 %v86, %v86
    %v103 = vmul.f32 %v87, %v87
    %v104 = vmul.f32 %v88, %v88
    %v105 = vmul.f32 %v89, %v89
    %v106 = vmul.f32 %v90, %v90
    %v107 = vmul.f32 %v91, %v91
    %v108 = vmul.f32 %v92, %v92
    %v109 = vmul.f32 %v93, %v93
    %v110 = vmul.f32 %v94, %v94
    %v111 = vmul.f32 %v95, %v95
    %v112 = vmul.f32 %v96, %v96
    %v113 = vmul.f32 %v97, %v97
    %v114 = vmul.f32 %v98, %v98
    %v115 = vadd.f32 %v99, %v100
    %116 = vadd.xlane.f32.xlu0 %v115
    %v117 = vpop.xlane.xlu0 %116
    %v118 = vadd.f32 %v101, %v102
    %119 = vadd.xlane.f32.xlu0 %v118
    %v120 = vpop.xlane.xlu0 %119
    %v121 = vadd.f32 %v103, %v104
    %122 = vadd.xlane.f32.xlu0 %v121
    %v123 = vpop.xlane.xlu0 %122
    %v124 = vadd.f32 %v105, %v106
    %125 = vadd.xlane.f32.xlu0 %v124
    %v126 = vpop.xlane.xlu0 %125
    %v127 = vadd.f32 %v107, %v108
    %128 = vadd.xlane.f32.xlu0 %v127
    %v129 = vpop.xlane.xlu0 %128
    %v130 = vadd.f32 %v109, %v110
    %131 = vadd.xlane.f32.xlu0 %v130
    %v132 = vpop.xlane.xlu0 %131
    %v133 = vadd.f32 %v111, %v112
    %134 = vadd.xlane.f32.xlu0 %v133
    %v135 = vpop.xlane.xlu0 %134
    %v136 = vadd.f32 %v113, %v114
    %137 = vadd.xlane.f32.xlu0 %v136
    %v138 = vpop.xlane.xlu0 %137
    %v139 = vmul.f32 %v117, 0.00390625
    %v140 = vmul.f32 %v120, 0.00390625
    %v141 = vmul.f32 %v123, 0.00390625
    %v142 = vmul.f32 %v126, 0.00390625
    %v143 = vmul.f32 %v129, 0.00390625
    %v144 = vmul.f32 %v132, 0.00390625
    %v145 = vmul.f32 %v135, 0.00390625
    %v146 = vmul.f32 %v138, 0.00390625
    %v147 = vrsqrt.pop %v139
    %v148 = vmul.f32 %v139, %v147
    %vm149 = vcmp.eq.f32.partialorder %v139, inf
    %v150 = vsel %vm149, %v139, %v148
    %vm151 = vcmp.eq.f32.partialorder %v139, 0.0
    %v152 = vand.u32 %v139, 2147483648
    %v153 = vsel %vm151, %v152, %v150
    %v154 = vrsqrt.pop %v140
    %v155 = vmul.f32 %v140, %v154
    %vm156 = vcmp.eq.f32.partialorder %v140, inf
    %v157 = vsel %vm156, %v140, %v155
    %vm158 = vcmp.eq.f32.partialorder %v140, 0.0
    %v159 = vand.u32 %v140, 2147483648
    %v160 = vsel %vm158, %v159, %v157
    %v161 = vrsqrt.pop %v141
    %v162 = vmul.f32 %v141, %v161
    %vm163 = vcmp.eq.f32.partialorder %v141, inf
    %v164 = vsel %vm163, %v141, %v162
    %vm165 = vcmp.eq.f32.partialorder %v141, 0.0
    %v166 = vand.u32 %v141, 2147483648
    %v167 = vsel %vm165, %v166, %v164
    %v168 = vrsqrt.pop %v142
    %v169 = vmul.f32 %v142, %v168
    %vm170 = vcmp.eq.f32.partialorder %v142, inf
    %v171 = vsel %vm170, %v142, %v169
    %vm172 = vcmp.eq.f32.partialorder %v142, 0.0
    %v173 = vand.u32 %v142, 2147483648
    %v174 = vsel %vm172, %v173, %v171
    %v175 = vrsqrt.pop %v143
    %v176 = vmul.f32 %v143, %v175
    %vm177 = vcmp.eq.f32.partialorder %v143, inf
    %v178 = vsel %vm177, %v143, %v176
    %vm179 = vcmp.eq.f32.partialorder %v143, 0.0
    %v180 = vand.u32 %v143, 2147483648
    %v181 = vsel %vm179, %v180, %v178
    %v182 = vrsqrt.pop %v144
    %v183 = vmul.f32 %v144, %v182
    %vm184 = vcmp.eq.f32.partialorder %v144, inf
    %v185 = vsel %vm184, %v144, %v183
    %vm186 = vcmp.eq.f32.partialorder %v144, 0.0
    %v187 = vand.u32 %v144, 2147483648
    %v188 = vsel %vm186, %v187, %v185
    %v189 = vrsqrt.pop %v145
    %v190 = vmul.f32 %v145, %v189
    %vm191 = vcmp.eq.f32.partialorder %v145, inf
    %v192 = vsel %vm191, %v145, %v190
    %vm193 = vcmp.eq.f32.partialorder %v145, 0.0
    %v194 = vand.u32 %v145, 2147483648
    %v195 = vsel %vm193, %v194, %v192
    %v196 = vrsqrt.pop %v146
    %v197 = vmul.f32 %v146, %v196
    %vm198 = vcmp.eq.f32.partialorder %v146, inf
    %v199 = vsel %vm198, %v146, %v197
    %vm200 = vcmp.eq.f32.partialorder %v146, 0.0
    %v201 = vand.u32 %v146, 2147483648
    %v202 = vsel %vm200, %v201, %v199
    %v203 = vadd.f32 %v153, %v75
    %v204 = vadd.f32 %v160, %v76
    %v205 = vadd.f32 %v167, %v77
    %v206 = vadd.f32 %v174, %v78
    %v207 = vadd.f32 %v181, %v79
    %v208 = vadd.f32 %v188, %v80
    %v209 = vadd.f32 %v195, %v81
    %v210 = vadd.f32 %v202, %v82
    %v211 = vld [vmem:[%s1] sm:$0x3]
    %v212 = vld [vmem:[%s2] sm:$0x1]
    %v213 = vld [vmem:[%s3] sm:$0xff]
    %v214 = vld [vmem:[%s3 + $0x8] sm:$0xff]
    %v215 = vld [vmem:[%s3 + $0x10] sm:$0xff]
    %v216 = vld [vmem:[%s3 + $0x18] sm:$0xff]
    %v217 = vld [vmem:[%s4] sm:$0x1]
    %v219 = vlaneseq
    %v220 = vshrl.u32 %v219, 7
    %v221 = vsub.s32 0, %v220
    %v222 = vrot.slane %v211, %v221
    %224 = vbcast.lane.b32.xlu0 %v222, 256
    %v225 = vpop.permute.xlu0 %224
    %s227 = sor.u32 256, 8
    %228 = vbcast.lane.b32.xlu0 %v222, %s227
    %v229 = vpop.permute.xlu0 %228
    %s231 = sor.u32 256, 16
    %232 = vbcast.lane.b32.xlu0 %v222, %s231
    %v233 = vpop.permute.xlu0 %232
    %s235 = sor.u32 256, 24
    %236 = vbcast.lane.b32.xlu0 %v222, %s235
    %v237 = vpop.permute.xlu0 %236
    %v238 = vlaneseq
    %v239 = vshrl.u32 %v238, 7
    %v240 = vsub.s32 1, %v239
    %v241 = vrot.slane %v211, %v240
    %243 = vbcast.lane.b32.xlu0 %v241, 256
    %v244 = vpop.permute.xlu0 %243
    %s246 = sor.u32 256, 8
    %247 = vbcast.lane.b32.xlu0 %v241, %s246
    %v248 = vpop.permute.xlu0 %247
    %s250 = sor.u32 256, 16
    %251 = vbcast.lane.b32.xlu0 %v241, %s250
    %v252 = vpop.permute.xlu0 %251
    %s254 = sor.u32 256, 24
    %255 = vbcast.lane.b32.xlu0 %v241, %s254
    %v256 = vpop.permute.xlu0 %255
    %v265 = vmul.f32 %v203, %v225
    %v266 = vmul.f32 %v204, %v229
    %v267 = vmul.f32 %v205, %v233
    %v268 = vmul.f32 %v206, %v237
    %v269 = vmul.f32 %v203, %v244
    %v270 = vmul.f32 %v204, %v248
    %v271 = vmul.f32 %v205, %v252
    %v272 = vmul.f32 %v206, %v256
    %v273 = vmul.f32 %v207, %v225
    %v274 = vmul.f32 %v208, %v229
    %v275 = vmul.f32 %v209, %v233
    %v276 = vmul.f32 %v210, %v237
    %v277 = vmul.f32 %v207, %v244
    %v278 = vmul.f32 %v208, %v248
    %v279 = vmul.f32 %v209, %v252
    %v280 = vmul.f32 %v210, %v256
    %297 = vset.pattern.permute.xlu0 0
    %298 = vperm.xlu0 %297, %v265
    %v299 = vpop.permute.xlu0 %298
    %300 = vset.pattern.permute.xlu0 0
    %301 = vperm.xlu0 %300, %v266
    %v302 = vpop.permute.xlu0 %301
    %303 = vset.pattern.permute.xlu0 0
    %304 = vperm.xlu0 %303, %v267
    %v305 = vpop.permute.xlu0 %304
    %306 = vset.pattern.permute.xlu0 0
    %307 = vperm.xlu0 %306, %v268
    %v308 = vpop.permute.xlu0 %307
    %309 = vset.pattern.permute.xlu0 0
    %310 = vperm.xlu0 %309, %v269
    %v311 = vpop.permute.xlu0 %310
    %312 = vset.pattern.permute.xlu0 0
    %313 = vperm.xlu0 %312, %v270
    %v314 = vpop.permute.xlu0 %313
    %315 = vset.pattern.permute.xlu0 0
    %316 = vperm.xlu0 %315, %v271
    %v317 = vpop.permute.xlu0 %316
    %318 = vset.pattern.permute.xlu0 0
    %319 = vperm.xlu0 %318, %v272
    %v320 = vpop.permute.xlu0 %319
    %321 = vset.pattern.permute.xlu0 0
    %322 = vperm.xlu0 %321, %v273
    %v323 = vpop.permute.xlu0 %322
    %324 = vset.pattern.permute.xlu0 0
    %325 = vperm.xlu0 %324, %v274
    %v326 = vpop.permute.xlu0 %325
    %327 = vset.pattern.permute.xlu0 0
    %328 = vperm.xlu0 %327, %v275
    %v329 = vpop.permute.xlu0 %328
    %330 = vset.pattern.permute.xlu0 0
    %331 = vperm.xlu0 %330, %v276
    %v332 = vpop.permute.xlu0 %331
    %333 = vset.pattern.permute.xlu0 0
    %334 = vperm.xlu0 %333, %v277
    %v335 = vpop.permute.xlu0 %334
    %336 = vset.pattern.permute.xlu0 0
    %337 = vperm.xlu0 %336, %v278
    %v338 = vpop.permute.xlu0 %337
    %339 = vset.pattern.permute.xlu0 0
    %340 = vperm.xlu0 %339, %v279
    %v341 = vpop.permute.xlu0 %340
    %342 = vset.pattern.permute.xlu0 0
    %343 = vperm.xlu0 %342, %v280
    %v344 = vpop.permute.xlu0 %343
    %v345 = vlaneseq
    %v346 = vand.u32 %v345, 127
    %v347 = vlaneseq
    %v348 = vshrl.u32 %v347, 7
    %v349 = vsub.s32 %v346, %v348
    %v350 = vrot.slane %v299, %v349
    %v351 = vadd.s32 %v346, 4294967288
    %v352 = vlaneseq
    %v353 = vshrl.u32 %v352, 7
    %v354 = vsub.s32 %v351, %v353
    %v355 = vrot.slane %v302, %v354
    %vm356 = vcmask 130112
    %v357 = vsel %vm356, %v355, %v350
    %v358 = vadd.s32 %v346, 4294967280
    %v359 = vlaneseq
    %v360 = vshrl.u32 %v359, 7
    %v361 = vsub.s32 %v358, %v360
    %v362 = vrot.slane %v305, %v361
    %vm363 = vcmask 195712
    %v364 = vsel %vm363, %v362, %v357
    %v365 = vadd.s32 %v346, 4294967272
    %v366 = vlaneseq
    %v367 = vshrl.u32 %v366, 7
    %v368 = vsub.s32 %v365, %v367
    %v369 = vrot.slane %v308, %v368
    %vm370 = vcmask 261312
    %v371 = vsel %vm370, %v369, %v364
    %v372 = vlaneseq
    %v373 = vshrl.u32 %v372, 7
    %v374 = vsub.s32 %v346, %v373
    %v375 = vrot.slane %v311, %v374
    %v376 = vlaneseq
    %v377 = vshrl.u32 %v376, 7
    %v378 = vsub.s32 %v351, %v377
    %v379 = vrot.slane %v314, %v378
    %v380 = vsel %vm356, %v379, %v375
    %v381 = vlaneseq
    %v382 = vshrl.u32 %v381, 7
    %v383 = vsub.s32 %v358, %v382
    %v384 = vrot.slane %v317, %v383
    %v385 = vsel %vm363, %v384, %v380
    %v386 = vlaneseq
    %v387 = vshrl.u32 %v386, 7
    %v388 = vsub.s32 %v365, %v387
    %v389 = vrot.slane %v320, %v388
    %v390 = vsel %vm370, %v389, %v385
    %v391 = vlaneseq
    %v392 = vshrl.u32 %v391, 7
    %v393 = vsub.s32 %v346, %v392
    %v394 = vrot.slane %v323, %v393
    %v395 = vlaneseq
    %v396 = vshrl.u32 %v395, 7
    %v397 = vsub.s32 %v351, %v396
    %v398 = vrot.slane %v326, %v397
    %v399 = vsel %vm356, %v398, %v394
    %v400 = vlaneseq
    %v401 = vshrl.u32 %v400, 7
    %v402 = vsub.s32 %v358, %v401
    %v403 = vrot.slane %v329, %v402
    %v404 = vsel %vm363, %v403, %v399
    %v405 = vlaneseq
    %v406 = vshrl.u32 %v405, 7
    %v407 = vsub.s32 %v365, %v406
    %v408 = vrot.slane %v332, %v407
    %v409 = vsel %vm370, %v408, %v404
    %v410 = vlaneseq
    %v411 = vshrl.u32 %v410, 7
    %v412 = vsub.s32 %v346, %v411
    %v413 = vrot.slane %v335, %v412
    %v414 = vlaneseq
    %v415 = vshrl.u32 %v414, 7
    %v416 = vsub.s32 %v351, %v415
    %v417 = vrot.slane %v338, %v416
    %v418 = vsel %vm356, %v417, %v413
    %v419 = vlaneseq
    %v420 = vshrl.u32 %v419, 7
    %v421 = vsub.s32 %v358, %v420
    %v422 = vrot.slane %v341, %v421
    %v423 = vsel %vm363, %v422, %v418
    %v424 = vlaneseq
    %v425 = vshrl.u32 %v424, 7
    %v426 = vsub.s32 %v365, %v425
    %v427 = vrot.slane %v344, %v426
    %v428 = vsel %vm370, %v427, %v423
    %vm429 = vcmask 1041409
    %v430 = vsel %vm429, %v390, %v371
    %v431 = vsel %vm429, %v428, %v409
    %vm434 = vcmask 254976
    %v435 = vsel %vm434, %v430, 0.0
    %436 = vadd.xlane.f32.xlu0 %v435
    %v437 = vpop.xlane.xlu0 %436
    %v438 = vsel %vm434, %v431, 0.0
    %439 = vadd.xlane.f32.xlu0 %v438
    %v440 = vpop.xlane.xlu0 %439
    %v442 = vlaneseq
    %v443 = vshrl.u32 %v442, 7
    %v444 = vsub.s32 0, %v443
    %v445 = vrot.slane %v212, %v444
    %447 = vbcast.lane.b32.xlu0 %v445, 256
    %v448 = vpop.permute.xlu0 %447
    %v450 = vadd.f32 %v437, %v448
    %v451 = vadd.f32 %v440, %v448
    %v452 = vmax.f32 %v450, 0.0
    %v453 = vmax.f32 %v451, 0.0
    %v458 = vlaneseq
    %v459 = vshrl.u32 %v458, 7
    %v460 = vsub.s32 0, %v459
    %v461 = vrot.slane %v213, %v460
    %463 = vbcast.lane.b32.xlu0 %v461, 256
    %v464 = vpop.permute.xlu0 %463
    %v465 = vlaneseq
    %v466 = vshrl.u32 %v465, 7
    %v467 = vsub.s32 1, %v466
    %v468 = vrot.slane %v213, %v467
    %470 = vbcast.lane.b32.xlu0 %v468, 256
    %v471 = vpop.permute.xlu0 %470
    %v472 = vlaneseq
    %v473 = vshrl.u32 %v472, 7
    %v474 = vsub.s32 2, %v473
    %v475 = vrot.slane %v213, %v474
    %477 = vbcast.lane.b32.xlu0 %v475, 256
    %v478 = vpop.permute.xlu0 %477
    %v479 = vlaneseq
    %v480 = vshrl.u32 %v479, 7
    %v481 = vsub.s32 3, %v480
    %v482 = vrot.slane %v213, %v481
    %484 = vbcast.lane.b32.xlu0 %v482, 256
    %v485 = vpop.permute.xlu0 %484
    %v486 = vlaneseq
    %v487 = vshrl.u32 %v486, 7
    %v488 = vsub.s32 4, %v487
    %v489 = vrot.slane %v213, %v488
    %491 = vbcast.lane.b32.xlu0 %v489, 256
    %v492 = vpop.permute.xlu0 %491
    %v493 = vlaneseq
    %v494 = vshrl.u32 %v493, 7
    %v495 = vsub.s32 5, %v494
    %v496 = vrot.slane %v213, %v495
    %498 = vbcast.lane.b32.xlu0 %v496, 256
    %v499 = vpop.permute.xlu0 %498
    %v500 = vlaneseq
    %v501 = vshrl.u32 %v500, 7
    %v502 = vsub.s32 6, %v501
    %v503 = vrot.slane %v213, %v502
    %505 = vbcast.lane.b32.xlu0 %v503, 256
    %v506 = vpop.permute.xlu0 %505
    %v507 = vlaneseq
    %v508 = vshrl.u32 %v507, 7
    %v509 = vsub.s32 7, %v508
    %v510 = vrot.slane %v213, %v509
    %512 = vbcast.lane.b32.xlu0 %v510, 256
    %v513 = vpop.permute.xlu0 %512
    %v514 = vlaneseq
    %v515 = vshrl.u32 %v514, 7
    %v516 = vsub.s32 0, %v515
    %v517 = vrot.slane %v214, %v516
    %519 = vbcast.lane.b32.xlu0 %v517, 256
    %v520 = vpop.permute.xlu0 %519
    %v521 = vlaneseq
    %v522 = vshrl.u32 %v521, 7
    %v523 = vsub.s32 1, %v522
    %v524 = vrot.slane %v214, %v523
    %526 = vbcast.lane.b32.xlu0 %v524, 256
    %v527 = vpop.permute.xlu0 %526
    %v528 = vlaneseq
    %v529 = vshrl.u32 %v528, 7
    %v530 = vsub.s32 2, %v529
    %v531 = vrot.slane %v214, %v530
    %533 = vbcast.lane.b32.xlu0 %v531, 256
    %v534 = vpop.permute.xlu0 %533
    %v535 = vlaneseq
    %v536 = vshrl.u32 %v535, 7
    %v537 = vsub.s32 3, %v536
    %v538 = vrot.slane %v214, %v537
    %540 = vbcast.lane.b32.xlu0 %v538, 256
    %v541 = vpop.permute.xlu0 %540
    %v542 = vlaneseq
    %v543 = vshrl.u32 %v542, 7
    %v544 = vsub.s32 4, %v543
    %v545 = vrot.slane %v214, %v544
    %547 = vbcast.lane.b32.xlu0 %v545, 256
    %v548 = vpop.permute.xlu0 %547
    %v549 = vlaneseq
    %v550 = vshrl.u32 %v549, 7
    %v551 = vsub.s32 5, %v550
    %v552 = vrot.slane %v214, %v551
    %554 = vbcast.lane.b32.xlu0 %v552, 256
    %v555 = vpop.permute.xlu0 %554
    %v556 = vlaneseq
    %v557 = vshrl.u32 %v556, 7
    %v558 = vsub.s32 6, %v557
    %v559 = vrot.slane %v214, %v558
    %561 = vbcast.lane.b32.xlu0 %v559, 256
    %v562 = vpop.permute.xlu0 %561
    %v563 = vlaneseq
    %v564 = vshrl.u32 %v563, 7
    %v565 = vsub.s32 7, %v564
    %v566 = vrot.slane %v214, %v565
    %568 = vbcast.lane.b32.xlu0 %v566, 256
    %v569 = vpop.permute.xlu0 %568
    %v570 = vlaneseq
    %v571 = vshrl.u32 %v570, 7
    %v572 = vsub.s32 0, %v571
    %v573 = vrot.slane %v215, %v572
    %575 = vbcast.lane.b32.xlu0 %v573, 256
    %v576 = vpop.permute.xlu0 %575
    %v577 = vlaneseq
    %v578 = vshrl.u32 %v577, 7
    %v579 = vsub.s32 1, %v578
    %v580 = vrot.slane %v215, %v579
    %582 = vbcast.lane.b32.xlu0 %v580, 256
    %v583 = vpop.permute.xlu0 %582
    %v584 = vlaneseq
    %v585 = vshrl.u32 %v584, 7
    %v586 = vsub.s32 2, %v585
    %v587 = vrot.slane %v215, %v586
    %589 = vbcast.lane.b32.xlu0 %v587, 256
    %v590 = vpop.permute.xlu0 %589
    %v591 = vlaneseq
    %v592 = vshrl.u32 %v591, 7
    %v593 = vsub.s32 3, %v592
    %v594 = vrot.slane %v215, %v593
    %596 = vbcast.lane.b32.xlu0 %v594, 256
    %v597 = vpop.permute.xlu0 %596
    %v598 = vlaneseq
    %v599 = vshrl.u32 %v598, 7
    %v600 = vsub.s32 4, %v599
    %v601 = vrot.slane %v215, %v600
    %603 = vbcast.lane.b32.xlu0 %v601, 256
    %v604 = vpop.permute.xlu0 %603
    %v605 = vlaneseq
    %v606 = vshrl.u32 %v605, 7
    %v607 = vsub.s32 5, %v606
    %v608 = vrot.slane %v215, %v607
    %610 = vbcast.lane.b32.xlu0 %v608, 256
    %v611 = vpop.permute.xlu0 %610
    %v612 = vlaneseq
    %v613 = vshrl.u32 %v612, 7
    %v614 = vsub.s32 6, %v613
    %v615 = vrot.slane %v215, %v614
    %617 = vbcast.lane.b32.xlu0 %v615, 256
    %v618 = vpop.permute.xlu0 %617
    %v619 = vlaneseq
    %v620 = vshrl.u32 %v619, 7
    %v621 = vsub.s32 7, %v620
    %v622 = vrot.slane %v215, %v621
    %624 = vbcast.lane.b32.xlu0 %v622, 256
    %v625 = vpop.permute.xlu0 %624
    %v626 = vlaneseq
    %v627 = vshrl.u32 %v626, 7
    %v628 = vsub.s32 0, %v627
    %v629 = vrot.slane %v216, %v628
    %631 = vbcast.lane.b32.xlu0 %v629, 256
    %v632 = vpop.permute.xlu0 %631
    %v633 = vlaneseq
    %v634 = vshrl.u32 %v633, 7
    %v635 = vsub.s32 1, %v634
    %v636 = vrot.slane %v216, %v635
    %638 = vbcast.lane.b32.xlu0 %v636, 256
    %v639 = vpop.permute.xlu0 %638
    %v640 = vlaneseq
    %v641 = vshrl.u32 %v640, 7
    %v642 = vsub.s32 2, %v641
    %v643 = vrot.slane %v216, %v642
    %645 = vbcast.lane.b32.xlu0 %v643, 256
    %v646 = vpop.permute.xlu0 %645
    %v647 = vlaneseq
    %v648 = vshrl.u32 %v647, 7
    %v649 = vsub.s32 3, %v648
    %v650 = vrot.slane %v216, %v649
    %652 = vbcast.lane.b32.xlu0 %v650, 256
    %v653 = vpop.permute.xlu0 %652
    %v654 = vlaneseq
    %v655 = vshrl.u32 %v654, 7
    %v656 = vsub.s32 4, %v655
    %v657 = vrot.slane %v216, %v656
    %659 = vbcast.lane.b32.xlu0 %v657, 256
    %v660 = vpop.permute.xlu0 %659
    %v661 = vlaneseq
    %v662 = vshrl.u32 %v661, 7
    %v663 = vsub.s32 5, %v662
    %v664 = vrot.slane %v216, %v663
    %666 = vbcast.lane.b32.xlu0 %v664, 256
    %v667 = vpop.permute.xlu0 %666
    %v668 = vlaneseq
    %v669 = vshrl.u32 %v668, 7
    %v670 = vsub.s32 6, %v669
    %v671 = vrot.slane %v216, %v670
    %673 = vbcast.lane.b32.xlu0 %v671, 256
    %v674 = vpop.permute.xlu0 %673
    %v675 = vlaneseq
    %v676 = vshrl.u32 %v675, 7
    %v677 = vsub.s32 7, %v676
    %v678 = vrot.slane %v216, %v677
    %680 = vbcast.lane.b32.xlu0 %v678, 256
    %v681 = vpop.permute.xlu0 %680
    %v714 = vmul.f32 %v452, %v464
    %v715 = vmul.f32 %v452, %v471
    %v716 = vmul.f32 %v452, %v478
    %v717 = vmul.f32 %v452, %v485
    %v718 = vmul.f32 %v452, %v492
    %v719 = vmul.f32 %v452, %v499
    %v720 = vmul.f32 %v452, %v506
    %v721 = vmul.f32 %v452, %v513
    %v722 = vmul.f32 %v452, %v520
    %v723 = vmul.f32 %v452, %v527
    %v724 = vmul.f32 %v452, %v534
    %v725 = vmul.f32 %v452, %v541
    %v726 = vmul.f32 %v452, %v548
    %v727 = vmul.f32 %v452, %v555
    %v728 = vmul.f32 %v452, %v562
    %v729 = vmul.f32 %v452, %v569
    %v730 = vmul.f32 %v452, %v576
    %v731 = vmul.f32 %v452, %v583
    %v732 = vmul.f32 %v452, %v590
    %v733 = vmul.f32 %v452, %v597
    %v734 = vmul.f32 %v452, %v604
    %v735 = vmul.f32 %v452, %v611
    %v736 = vmul.f32 %v452, %v618
    %v737 = vmul.f32 %v452, %v625
    %v738 = vmul.f32 %v452, %v632
    %v739 = vmul.f32 %v452, %v639
    %v740 = vmul.f32 %v452, %v646
    %v741 = vmul.f32 %v452, %v653
    %v742 = vmul.f32 %v452, %v660
    %v743 = vmul.f32 %v452, %v667
    %v744 = vmul.f32 %v452, %v674
    %v745 = vmul.f32 %v452, %v681
    %v746 = vmul.f32 %v453, %v464
    %v747 = vmul.f32 %v453, %v471
    %v748 = vmul.f32 %v453, %v478
    %v749 = vmul.f32 %v453, %v485
    %v750 = vmul.f32 %v453, %v492
    %v751 = vmul.f32 %v453, %v499
    %v752 = vmul.f32 %v453, %v506
    %v753 = vmul.f32 %v453, %v513
    %v754 = vmul.f32 %v453, %v520
    %v755 = vmul.f32 %v453, %v527
    %v756 = vmul.f32 %v453, %v534
    %v757 = vmul.f32 %v453, %v541
    %v758 = vmul.f32 %v453, %v548
    %v759 = vmul.f32 %v453, %v555
    %v760 = vmul.f32 %v453, %v562
    %v761 = vmul.f32 %v453, %v569
    %v762 = vmul.f32 %v453, %v576
    %v763 = vmul.f32 %v453, %v583
    %v764 = vmul.f32 %v453, %v590
    %v765 = vmul.f32 %v453, %v597
    %v766 = vmul.f32 %v453, %v604
    %v767 = vmul.f32 %v453, %v611
    %v768 = vmul.f32 %v453, %v618
    %v769 = vmul.f32 %v453, %v625
    %v770 = vmul.f32 %v453, %v632
    %v771 = vmul.f32 %v453, %v639
    %v772 = vmul.f32 %v453, %v646
    %v773 = vmul.f32 %v453, %v653
    %v774 = vmul.f32 %v453, %v660
    %v775 = vmul.f32 %v453, %v667
    %v776 = vmul.f32 %v453, %v674
    %v777 = vmul.f32 %v453, %v681
    %842 = vset.pattern.permute.xlu0 0
    %843 = vperm.xlu0 %842, %v714
    %v844 = vpop.permute.xlu0 %843
    %845 = vset.pattern.permute.xlu0 0
    %846 = vperm.xlu0 %845, %v715
    %v847 = vpop.permute.xlu0 %846
    %848 = vset.pattern.permute.xlu0 0
    %849 = vperm.xlu0 %848, %v716
    %v850 = vpop.permute.xlu0 %849
    %851 = vset.pattern.permute.xlu0 0
    %852 = vperm.xlu0 %851, %v717
    %v853 = vpop.permute.xlu0 %852
    %854 = vset.pattern.permute.xlu0 0
    %855 = vperm.xlu0 %854, %v718
    %v856 = vpop.permute.xlu0 %855
    %857 = vset.pattern.permute.xlu0 0
    %858 = vperm.xlu0 %857, %v719
    %v859 = vpop.permute.xlu0 %858
    %860 = vset.pattern.permute.xlu0 0
    %861 = vperm.xlu0 %860, %v720
    %v862 = vpop.permute.xlu0 %861
    %863 = vset.pattern.permute.xlu0 0
    %864 = vperm.xlu0 %863, %v721
    %v865 = vpop.permute.xlu0 %864
    %866 = vset.pattern.permute.xlu0 0
    %867 = vperm.xlu0 %866, %v722
    %v868 = vpop.permute.xlu0 %867
    %869 = vset.pattern.permute.xlu0 0
    %870 = vperm.xlu0 %869, %v723
    %v871 = vpop.permute.xlu0 %870
    %872 = vset.pattern.permute.xlu0 0
    %873 = vperm.xlu0 %872, %v724
    %v874 = vpop.permute.xlu0 %873
    %875 = vset.pattern.permute.xlu0 0
    %876 = vperm.xlu0 %875, %v725
    %v877 = vpop.permute.xlu0 %876
    %878 = vset.pattern.permute.xlu0 0
    %879 = vperm.xlu0 %878, %v726
    %v880 = vpop.permute.xlu0 %879
    %881 = vset.pattern.permute.xlu0 0
    %882 = vperm.xlu0 %881, %v727
    %v883 = vpop.permute.xlu0 %882
    %884 = vset.pattern.permute.xlu0 0
    %885 = vperm.xlu0 %884, %v728
    %v886 = vpop.permute.xlu0 %885
    %887 = vset.pattern.permute.xlu0 0
    %888 = vperm.xlu0 %887, %v729
    %v889 = vpop.permute.xlu0 %888
    %890 = vset.pattern.permute.xlu0 0
    %891 = vperm.xlu0 %890, %v730
    %v892 = vpop.permute.xlu0 %891
    %893 = vset.pattern.permute.xlu0 0
    %894 = vperm.xlu0 %893, %v731
    %v895 = vpop.permute.xlu0 %894
    %896 = vset.pattern.permute.xlu0 0
    %897 = vperm.xlu0 %896, %v732
    %v898 = vpop.permute.xlu0 %897
    %899 = vset.pattern.permute.xlu0 0
    %900 = vperm.xlu0 %899, %v733
    %v901 = vpop.permute.xlu0 %900
    %902 = vset.pattern.permute.xlu0 0
    %903 = vperm.xlu0 %902, %v734
    %v904 = vpop.permute.xlu0 %903
    %905 = vset.pattern.permute.xlu0 0
    %906 = vperm.xlu0 %905, %v735
    %v907 = vpop.permute.xlu0 %906
    %908 = vset.pattern.permute.xlu0 0
    %909 = vperm.xlu0 %908, %v736
    %v910 = vpop.permute.xlu0 %909
    %911 = vset.pattern.permute.xlu0 0
    %912 = vperm.xlu0 %911, %v737
    %v913 = vpop.permute.xlu0 %912
    %914 = vset.pattern.permute.xlu0 0
    %915 = vperm.xlu0 %914, %v738
    %v916 = vpop.permute.xlu0 %915
    %917 = vset.pattern.permute.xlu0 0
    %918 = vperm.xlu0 %917, %v739
    %v919 = vpop.permute.xlu0 %918
    %920 = vset.pattern.permute.xlu0 0
    %921 = vperm.xlu0 %920, %v740
    %v922 = vpop.permute.xlu0 %921
    %923 = vset.pattern.permute.xlu0 0
    %924 = vperm.xlu0 %923, %v741
    %v925 = vpop.permute.xlu0 %924
    %926 = vset.pattern.permute.xlu0 0
    %927 = vperm.xlu0 %926, %v742
    %v928 = vpop.permute.xlu0 %927
    %929 = vset.pattern.permute.xlu0 0
    %930 = vperm.xlu0 %929, %v743
    %v931 = vpop.permute.xlu0 %930
    %932 = vset.pattern.permute.xlu0 0
    %933 = vperm.xlu0 %932, %v744
    %v934 = vpop.permute.xlu0 %933
    %935 = vset.pattern.permute.xlu0 0
    %936 = vperm.xlu0 %935, %v745
    %v937 = vpop.permute.xlu0 %936
    %938 = vset.pattern.permute.xlu0 0
    %939 = vperm.xlu0 %938, %v746
    %v940 = vpop.permute.xlu0 %939
    %941 = vset.pattern.permute.xlu0 0
    %942 = vperm.xlu0 %941, %v747
    %v943 = vpop.permute.xlu0 %942
    %944 = vset.pattern.permute.xlu0 0
    %945 = vperm.xlu0 %944, %v748
    %v946 = vpop.permute.xlu0 %945
    %947 = vset.pattern.permute.xlu0 0
    %948 = vperm.xlu0 %947, %v749
    %v949 = vpop.permute.xlu0 %948
    %950 = vset.pattern.permute.xlu0 0
    %951 = vperm.xlu0 %950, %v750
    %v952 = vpop.permute.xlu0 %951
    %953 = vset.pattern.permute.xlu0 0
    %954 = vperm.xlu0 %953, %v751
    %v955 = vpop.permute.xlu0 %954
    %956 = vset.pattern.permute.xlu0 0
    %957 = vperm.xlu0 %956, %v752
    %v958 = vpop.permute.xlu0 %957
    %959 = vset.pattern.permute.xlu0 0
    %960 = vperm.xlu0 %959, %v753
    %v961 = vpop.permute.xlu0 %960
    %962 = vset.pattern.permute.xlu0 0
    %963 = vperm.xlu0 %962, %v754
    %v964 = vpop.permute.xlu0 %963
    %965 = vset.pattern.permute.xlu0 0
    %966 = vperm.xlu0 %965, %v755
    %v967 = vpop.permute.xlu0 %966
    %968 = vset.pattern.permute.xlu0 0
    %969 = vperm.xlu0 %968, %v756
    %v970 = vpop.permute.xlu0 %969
    %971 = vset.pattern.permute.xlu0 0
    %972 = vperm.xlu0 %971, %v757
    %v973 = vpop.permute.xlu0 %972
    %974 = vset.pattern.permute.xlu0 0
    %975 = vperm.xlu0 %974, %v758
    %v976 = vpop.permute.xlu0 %975
    %977 = vset.pattern.permute.xlu0 0
    %978 = vperm.xlu0 %977, %v759
    %v979 = vpop.permute.xlu0 %978
    %980 = vset.pattern.permute.xlu0 0
    %981 = vperm.xlu0 %980, %v760
    %v982 = vpop.permute.xlu0 %981
    %983 = vset.pattern.permute.xlu0 0
    %984 = vperm.xlu0 %983, %v761
    %v985 = vpop.permute.xlu0 %984
    %986 = vset.pattern.permute.xlu0 0
    %987 = vperm.xlu0 %986, %v762
    %v988 = vpop.permute.xlu0 %987
    %989 = vset.pattern.permute.xlu0 0
    %990 = vperm.xlu0 %989, %v763
    %v991 = vpop.permute.xlu0 %990
    %992 = vset.pattern.permute.xlu0 0
    %993 = vperm.xlu0 %992, %v764
    %v994 = vpop.permute.xlu0 %993
    %995 = vset.pattern.permute.xlu0 0
    %996 = vperm.xlu0 %995, %v765
    %v997 = vpop.permute.xlu0 %996
    %998 = vset.pattern.permute.xlu0 0
    %999 = vperm.xlu0 %998, %v766
    %v1000 = vpop.permute.xlu0 %999
    %1001 = vset.pattern.permute.xlu0 0
    %1002 = vperm.xlu0 %1001, %v767
    %v1003 = vpop.permute.xlu0 %1002
    %1004 = vset.pattern.permute.xlu0 0
    %1005 = vperm.xlu0 %1004, %v768
    %v1006 = vpop.permute.xlu0 %1005
    %1007 = vset.pattern.permute.xlu0 0
    %1008 = vperm.xlu0 %1007, %v769
    %v1009 = vpop.permute.xlu0 %1008
    %1010 = vset.pattern.permute.xlu0 0
    %1011 = vperm.xlu0 %1010, %v770
    %v1012 = vpop.permute.xlu0 %1011
    %1013 = vset.pattern.permute.xlu0 0
    %1014 = vperm.xlu0 %1013, %v771
    %v1015 = vpop.permute.xlu0 %1014
    %1016 = vset.pattern.permute.xlu0 0
    %1017 = vperm.xlu0 %1016, %v772
    %v1018 = vpop.permute.xlu0 %1017
    %1019 = vset.pattern.permute.xlu0 0
    %1020 = vperm.xlu0 %1019, %v773
    %v1021 = vpop.permute.xlu0 %1020
    %1022 = vset.pattern.permute.xlu0 0
    %1023 = vperm.xlu0 %1022, %v774
    %v1024 = vpop.permute.xlu0 %1023
    %1025 = vset.pattern.permute.xlu0 0
    %1026 = vperm.xlu0 %1025, %v775
    %v1027 = vpop.permute.xlu0 %1026
    %1028 = vset.pattern.permute.xlu0 0
    %1029 = vperm.xlu0 %1028, %v776
    %v1030 = vpop.permute.xlu0 %1029
    %1031 = vset.pattern.permute.xlu0 0
    %1032 = vperm.xlu0 %1031, %v777
    %v1033 = vpop.permute.xlu0 %1032
    %v1034 = vlaneseq
    %v1035 = vshrl.u32 %v1034, 7
    %v1036 = vsub.s32 %v346, %v1035
    %v1037 = vrot.slane %v844, %v1036
    %v1038 = vlaneseq
    %v1039 = vshrl.u32 %v1038, 7
    %v1040 = vsub.s32 %v346, %v1039
    %v1041 = vrot.slane %v847, %v1040
    %v1042 = vlaneseq
    %v1043 = vshrl.u32 %v1042, 7
    %v1044 = vsub.s32 %v346, %v1043
    %v1045 = vrot.slane %v850, %v1044
    %v1046 = vlaneseq
    %v1047 = vshrl.u32 %v1046, 7
    %v1048 = vsub.s32 %v346, %v1047
    %v1049 = vrot.slane %v853, %v1048
    %v1050 = vlaneseq
    %v1051 = vshrl.u32 %v1050, 7
    %v1052 = vsub.s32 %v346, %v1051
    %v1053 = vrot.slane %v856, %v1052
    %v1054 = vlaneseq
    %v1055 = vshrl.u32 %v1054, 7
    %v1056 = vsub.s32 %v346, %v1055
    %v1057 = vrot.slane %v859, %v1056
    %v1058 = vlaneseq
    %v1059 = vshrl.u32 %v1058, 7
    %v1060 = vsub.s32 %v346, %v1059
    %v1061 = vrot.slane %v862, %v1060
    %v1062 = vlaneseq
    %v1063 = vshrl.u32 %v1062, 7
    %v1064 = vsub.s32 %v346, %v1063
    %v1065 = vrot.slane %v865, %v1064
    %v1066 = vlaneseq
    %v1067 = vshrl.u32 %v1066, 7
    %v1068 = vsub.s32 %v346, %v1067
    %v1069 = vrot.slane %v868, %v1068
    %v1070 = vlaneseq
    %v1071 = vshrl.u32 %v1070, 7
    %v1072 = vsub.s32 %v346, %v1071
    %v1073 = vrot.slane %v871, %v1072
    %v1074 = vlaneseq
    %v1075 = vshrl.u32 %v1074, 7
    %v1076 = vsub.s32 %v346, %v1075
    %v1077 = vrot.slane %v874, %v1076
    %v1078 = vlaneseq
    %v1079 = vshrl.u32 %v1078, 7
    %v1080 = vsub.s32 %v346, %v1079
    %v1081 = vrot.slane %v877, %v1080
    %v1082 = vlaneseq
    %v1083 = vshrl.u32 %v1082, 7
    %v1084 = vsub.s32 %v346, %v1083
    %v1085 = vrot.slane %v880, %v1084
    %v1086 = vlaneseq
    %v1087 = vshrl.u32 %v1086, 7
    %v1088 = vsub.s32 %v346, %v1087
    %v1089 = vrot.slane %v883, %v1088
    %v1090 = vlaneseq
    %v1091 = vshrl.u32 %v1090, 7
    %v1092 = vsub.s32 %v346, %v1091
    %v1093 = vrot.slane %v886, %v1092
    %v1094 = vlaneseq
    %v1095 = vshrl.u32 %v1094, 7
    %v1096 = vsub.s32 %v346, %v1095
    %v1097 = vrot.slane %v889, %v1096
    %v1098 = vlaneseq
    %v1099 = vshrl.u32 %v1098, 7
    %v1100 = vsub.s32 %v346, %v1099
    %v1101 = vrot.slane %v892, %v1100
    %v1102 = vlaneseq
    %v1103 = vshrl.u32 %v1102, 7
    %v1104 = vsub.s32 %v346, %v1103
    %v1105 = vrot.slane %v895, %v1104
    %v1106 = vlaneseq
    %v1107 = vshrl.u32 %v1106, 7
    %v1108 = vsub.s32 %v346, %v1107
    %v1109 = vrot.slane %v898, %v1108
    %v1110 = vlaneseq
    %v1111 = vshrl.u32 %v1110, 7
    %v1112 = vsub.s32 %v346, %v1111
    %v1113 = vrot.slane %v901, %v1112
    %v1114 = vlaneseq
    %v1115 = vshrl.u32 %v1114, 7
    %v1116 = vsub.s32 %v346, %v1115
    %v1117 = vrot.slane %v904, %v1116
    %v1118 = vlaneseq
    %v1119 = vshrl.u32 %v1118, 7
    %v1120 = vsub.s32 %v346, %v1119
    %v1121 = vrot.slane %v907, %v1120
    %v1122 = vlaneseq
    %v1123 = vshrl.u32 %v1122, 7
    %v1124 = vsub.s32 %v346, %v1123
    %v1125 = vrot.slane %v910, %v1124
    %v1126 = vlaneseq
    %v1127 = vshrl.u32 %v1126, 7
    %v1128 = vsub.s32 %v346, %v1127
    %v1129 = vrot.slane %v913, %v1128
    %v1130 = vlaneseq
    %v1131 = vshrl.u32 %v1130, 7
    %v1132 = vsub.s32 %v346, %v1131
    %v1133 = vrot.slane %v916, %v1132
    %v1134 = vlaneseq
    %v1135 = vshrl.u32 %v1134, 7
    %v1136 = vsub.s32 %v346, %v1135
    %v1137 = vrot.slane %v919, %v1136
    %v1138 = vlaneseq
    %v1139 = vshrl.u32 %v1138, 7
    %v1140 = vsub.s32 %v346, %v1139
    %v1141 = vrot.slane %v922, %v1140
    %v1142 = vlaneseq
    %v1143 = vshrl.u32 %v1142, 7
    %v1144 = vsub.s32 %v346, %v1143
    %v1145 = vrot.slane %v925, %v1144
    %v1146 = vlaneseq
    %v1147 = vshrl.u32 %v1146, 7
    %v1148 = vsub.s32 %v346, %v1147
    %v1149 = vrot.slane %v928, %v1148
    %v1150 = vlaneseq
    %v1151 = vshrl.u32 %v1150, 7
    %v1152 = vsub.s32 %v346, %v1151
    %v1153 = vrot.slane %v931, %v1152
    %v1154 = vlaneseq
    %v1155 = vshrl.u32 %v1154, 7
    %v1156 = vsub.s32 %v346, %v1155
    %v1157 = vrot.slane %v934, %v1156
    %v1158 = vlaneseq
    %v1159 = vshrl.u32 %v1158, 7
    %v1160 = vsub.s32 %v346, %v1159
    %v1161 = vrot.slane %v937, %v1160
    %v1162 = vlaneseq
    %v1163 = vshrl.u32 %v1162, 7
    %v1164 = vsub.s32 %v346, %v1163
    %v1165 = vrot.slane %v940, %v1164
    %v1166 = vlaneseq
    %v1167 = vshrl.u32 %v1166, 7
    %v1168 = vsub.s32 %v346, %v1167
    %v1169 = vrot.slane %v943, %v1168
    %v1170 = vlaneseq
    %v1171 = vshrl.u32 %v1170, 7
    %v1172 = vsub.s32 %v346, %v1171
    %v1173 = vrot.slane %v946, %v1172
    %v1174 = vlaneseq
    %v1175 = vshrl.u32 %v1174, 7
    %v1176 = vsub.s32 %v346, %v1175
    %v1177 = vrot.slane %v949, %v1176
    %v1178 = vlaneseq
    %v1179 = vshrl.u32 %v1178, 7
    %v1180 = vsub.s32 %v346, %v1179
    %v1181 = vrot.slane %v952, %v1180
    %v1182 = vlaneseq
    %v1183 = vshrl.u32 %v1182, 7
    %v1184 = vsub.s32 %v346, %v1183
    %v1185 = vrot.slane %v955, %v1184
    %v1186 = vlaneseq
    %v1187 = vshrl.u32 %v1186, 7
    %v1188 = vsub.s32 %v346, %v1187
    %v1189 = vrot.slane %v958, %v1188
    %v1190 = vlaneseq
    %v1191 = vshrl.u32 %v1190, 7
    %v1192 = vsub.s32 %v346, %v1191
    %v1193 = vrot.slane %v961, %v1192
    %v1194 = vlaneseq
    %v1195 = vshrl.u32 %v1194, 7
    %v1196 = vsub.s32 %v346, %v1195
    %v1197 = vrot.slane %v964, %v1196
    %v1198 = vlaneseq
    %v1199 = vshrl.u32 %v1198, 7
    %v1200 = vsub.s32 %v346, %v1199
    %v1201 = vrot.slane %v967, %v1200
    %v1202 = vlaneseq
    %v1203 = vshrl.u32 %v1202, 7
    %v1204 = vsub.s32 %v346, %v1203
    %v1205 = vrot.slane %v970, %v1204
    %v1206 = vlaneseq
    %v1207 = vshrl.u32 %v1206, 7
    %v1208 = vsub.s32 %v346, %v1207
    %v1209 = vrot.slane %v973, %v1208
    %v1210 = vlaneseq
    %v1211 = vshrl.u32 %v1210, 7
    %v1212 = vsub.s32 %v346, %v1211
    %v1213 = vrot.slane %v976, %v1212
    %v1214 = vlaneseq
    %v1215 = vshrl.u32 %v1214, 7
    %v1216 = vsub.s32 %v346, %v1215
    %v1217 = vrot.slane %v979, %v1216
    %v1218 = vlaneseq
    %v1219 = vshrl.u32 %v1218, 7
    %v1220 = vsub.s32 %v346, %v1219
    %v1221 = vrot.slane %v982, %v1220
    %v1222 = vlaneseq
    %v1223 = vshrl.u32 %v1222, 7
    %v1224 = vsub.s32 %v346, %v1223
    %v1225 = vrot.slane %v985, %v1224
    %v1226 = vlaneseq
    %v1227 = vshrl.u32 %v1226, 7
    %v1228 = vsub.s32 %v346, %v1227
    %v1229 = vrot.slane %v988, %v1228
    %v1230 = vlaneseq
    %v1231 = vshrl.u32 %v1230, 7
    %v1232 = vsub.s32 %v346, %v1231
    %v1233 = vrot.slane %v991, %v1232
    %v1234 = vlaneseq
    %v1235 = vshrl.u32 %v1234, 7
    %v1236 = vsub.s32 %v346, %v1235
    %v1237 = vrot.slane %v994, %v1236
    %v1238 = vlaneseq
    %v1239 = vshrl.u32 %v1238, 7
    %v1240 = vsub.s32 %v346, %v1239
    %v1241 = vrot.slane %v997, %v1240
    %v1242 = vlaneseq
    %v1243 = vshrl.u32 %v1242, 7
    %v1244 = vsub.s32 %v346, %v1243
    %v1245 = vrot.slane %v1000, %v1244
    %v1246 = vlaneseq
    %v1247 = vshrl.u32 %v1246, 7
    %v1248 = vsub.s32 %v346, %v1247
    %v1249 = vrot.slane %v1003, %v1248
    %v1250 = vlaneseq
    %v1251 = vshrl.u32 %v1250, 7
    %v1252 = vsub.s32 %v346, %v1251
    %v1253 = vrot.slane %v1006, %v1252
    %v1254 = vlaneseq
    %v1255 = vshrl.u32 %v1254, 7
    %v1256 = vsub.s32 %v346, %v1255
    %v1257 = vrot.slane %v1009, %v1256
    %v1258 = vlaneseq
    %v1259 = vshrl.u32 %v1258, 7
    %v1260 = vsub.s32 %v346, %v1259
    %v1261 = vrot.slane %v1012, %v1260
    %v1262 = vlaneseq
    %v1263 = vshrl.u32 %v1262, 7
    %v1264 = vsub.s32 %v346, %v1263
    %v1265 = vrot.slane %v1015, %v1264
    %v1266 = vlaneseq
    %v1267 = vshrl.u32 %v1266, 7
    %v1268 = vsub.s32 %v346, %v1267
    %v1269 = vrot.slane %v1018, %v1268
    %v1270 = vlaneseq
    %v1271 = vshrl.u32 %v1270, 7
    %v1272 = vsub.s32 %v346, %v1271
    %v1273 = vrot.slane %v1021, %v1272
    %v1274 = vlaneseq
    %v1275 = vshrl.u32 %v1274, 7
    %v1276 = vsub.s32 %v346, %v1275
    %v1277 = vrot.slane %v1024, %v1276
    %v1278 = vlaneseq
    %v1279 = vshrl.u32 %v1278, 7
    %v1280 = vsub.s32 %v346, %v1279
    %v1281 = vrot.slane %v1027, %v1280
    %v1282 = vlaneseq
    %v1283 = vshrl.u32 %v1282, 7
    %v1284 = vsub.s32 %v346, %v1283
    %v1285 = vrot.slane %v1030, %v1284
    %v1286 = vlaneseq
    %v1287 = vshrl.u32 %v1286, 7
    %v1288 = vsub.s32 %v346, %v1287
    %v1289 = vrot.slane %v1033, %v1288
    %v1290 = vsel %vm429, %v1041, %v1037
    %vm1291 = vcmask 1042434
    %v1292 = vsel %vm1291, %v1045, %v1290
    %vm1293 = vcmask 1043459
    %v1294 = vsel %vm1293, %v1049, %v1292
    %vm1295 = vcmask 1044484
    %v1296 = vsel %vm1295, %v1053, %v1294
    %vm1297 = vcmask 1045509
    %v1298 = vsel %vm1297, %v1057, %v1296
    %vm1299 = vcmask 1046534
    %v1300 = vsel %vm1299, %v1061, %v1298
    %vm1301 = vcmask 1047559
    %v1302 = vsel %vm1301, %v1065, %v1300
    %v1303 = vsel %vm429, %v1073, %v1069
    %v1304 = vsel %vm1291, %v1077, %v1303
    %v1305 = vsel %vm1293, %v1081, %v1304
    %v1306 = vsel %vm1295, %v1085, %v1305
    %v1307 = vsel %vm1297, %v1089, %v1306
    %v1308 = vsel %vm1299, %v1093, %v1307
    %v1309 = vsel %vm1301, %v1097, %v1308
    %v1310 = vsel %vm429, %v1105, %v1101
    %v1311 = vsel %vm1291, %v1109, %v1310
    %v1312 = vsel %vm1293, %v1113, %v1311
    %v1313 = vsel %vm1295, %v1117, %v1312
    %v1314 = vsel %vm1297, %v1121, %v1313
    %v1315 = vsel %vm1299, %v1125, %v1314
    %v1316 = vsel %vm1301, %v1129, %v1315
    %v1317 = vsel %vm429, %v1137, %v1133
    %v1318 = vsel %vm1291, %v1141, %v1317
    %v1319 = vsel %vm1293, %v1145, %v1318
    %v1320 = vsel %vm1295, %v1149, %v1319
    %v1321 = vsel %vm1297, %v1153, %v1320
    %v1322 = vsel %vm1299, %v1157, %v1321
    %v1323 = vsel %vm1301, %v1161, %v1322
    %v1324 = vsel %vm429, %v1169, %v1165
    %v1325 = vsel %vm1291, %v1173, %v1324
    %v1326 = vsel %vm1293, %v1177, %v1325
    %v1327 = vsel %vm1295, %v1181, %v1326
    %v1328 = vsel %vm1297, %v1185, %v1327
    %v1329 = vsel %vm1299, %v1189, %v1328
    %v1330 = vsel %vm1301, %v1193, %v1329
    %v1331 = vsel %vm429, %v1201, %v1197
    %v1332 = vsel %vm1291, %v1205, %v1331
    %v1333 = vsel %vm1293, %v1209, %v1332
    %v1334 = vsel %vm1295, %v1213, %v1333
    %v1335 = vsel %vm1297, %v1217, %v1334
    %v1336 = vsel %vm1299, %v1221, %v1335
    %v1337 = vsel %vm1301, %v1225, %v1336
    %v1338 = vsel %vm429, %v1233, %v1229
    %v1339 = vsel %vm1291, %v1237, %v1338
    %v1340 = vsel %vm1293, %v1241, %v1339
    %v1341 = vsel %vm1295, %v1245, %v1340
    %v1342 = vsel %vm1297, %v1249, %v1341
    %v1343 = vsel %vm1299, %v1253, %v1342
    %v1344 = vsel %vm1301, %v1257, %v1343
    %v1345 = vsel %vm429, %v1265, %v1261
    %v1346 = vsel %vm1291, %v1269, %v1345
    %v1347 = vsel %vm1293, %v1273, %v1346
    %v1348 = vsel %vm1295, %v1277, %v1347
    %v1349 = vsel %vm1297, %v1281, %v1348
    %v1350 = vsel %vm1299, %v1285, %v1349
    %v1351 = vsel %vm1301, %v1289, %v1350
    %vm1360 = vcmask 15360
    %v1361 = vsel %vm1360, %v1302, 0.0
    %1362 = vadd.xlane.f32.xlu0 %v1361
    %v1363 = vpop.xlane.xlu0 %1362
    %v1364 = vsel %vm1360, %v1309, 0.0
    %1365 = vadd.xlane.f32.xlu0 %v1364
    %v1366 = vpop.xlane.xlu0 %1365
    %v1367 = vsel %vm1360, %v1316, 0.0
    %1368 = vadd.xlane.f32.xlu0 %v1367
    %v1369 = vpop.xlane.xlu0 %1368
    %v1370 = vsel %vm1360, %v1323, 0.0
    %1371 = vadd.xlane.f32.xlu0 %v1370
    %v1372 = vpop.xlane.xlu0 %1371
    %v1373 = vsel %vm1360, %v1330, 0.0
    %1374 = vadd.xlane.f32.xlu0 %v1373
    %v1375 = vpop.xlane.xlu0 %1374
    %v1376 = vsel %vm1360, %v1337, 0.0
    %1377 = vadd.xlane.f32.xlu0 %v1376
    %v1378 = vpop.xlane.xlu0 %1377
    %v1379 = vsel %vm1360, %v1344, 0.0
    %1380 = vadd.xlane.f32.xlu0 %v1379
    %v1381 = vpop.xlane.xlu0 %1380
    %v1382 = vsel %vm1360, %v1351, 0.0
    %1383 = vadd.xlane.f32.xlu0 %v1382
    %v1384 = vpop.xlane.xlu0 %1383
    %v1386 = vlaneseq
    %v1387 = vshrl.u32 %v1386, 7
    %v1388 = vsub.s32 0, %v1387
    %v1389 = vrot.slane %v217, %v1388
    %1391 = vbcast.lane.b32.xlu0 %v1389, 256
    %v1392 = vpop.permute.xlu0 %1391
    %s1394 = sor.u32 256, 8
    %1395 = vbcast.lane.b32.xlu0 %v1389, %s1394
    %v1396 = vpop.permute.xlu0 %1395
    %s1398 = sor.u32 256, 16
    %1399 = vbcast.lane.b32.xlu0 %v1389, %s1398
    %v1400 = vpop.permute.xlu0 %1399
    %s1402 = sor.u32 256, 24
    %1403 = vbcast.lane.b32.xlu0 %v1389, %s1402
    %v1404 = vpop.permute.xlu0 %1403
    %v1409 = vadd.f32 %v1363, %v1392
    %v1410 = vadd.f32 %v1366, %v1396
    %v1411 = vadd.f32 %v1369, %v1400
    %v1412 = vadd.f32 %v1372, %v1404
    %v1413 = vadd.f32 %v1375, %v1392
    %v1414 = vadd.f32 %v1378, %v1396
    %v1415 = vadd.f32 %v1381, %v1400
    %v1416 = vadd.f32 %v1384, %v1404
    %v1417 = vxor.u32 %v1409, 2147483648
    %v1418 = vxor.u32 %v1410, 2147483648
    %v1419 = vxor.u32 %v1411, 2147483648
    %v1420 = vxor.u32 %v1412, 2147483648
    %v1421 = vxor.u32 %v1413, 2147483648
    %v1422 = vxor.u32 %v1414, 2147483648
    %v1423 = vxor.u32 %v1415, 2147483648
    %v1424 = vxor.u32 %v1416, 2147483648
    %v1425 = vmul.f32 %v1417, 1.442695
    %v1426 = vpow.pop %v1425
    %v1427 = vmul.f32 %v1418, 1.442695
    %v1428 = vpow.pop %v1427
    %v1429 = vmul.f32 %v1419, 1.442695
    %v1430 = vpow.pop %v1429
    %v1431 = vmul.f32 %v1420, 1.442695
    %v1432 = vpow.pop %v1431
    %v1433 = vmul.f32 %v1421, 1.442695
    %v1434 = vpow.pop %v1433
    %v1435 = vmul.f32 %v1422, 1.442695
    %v1436 = vpow.pop %v1435
    %v1437 = vmul.f32 %v1423, 1.442695
    %v1438 = vpow.pop %v1437
    %v1439 = vmul.f32 %v1424, 1.442695
    %v1440 = vpow.pop %v1439
    %v1441 = vadd.f32 %v1426, 1.0
    %v1442 = vadd.f32 %v1428, 1.0
    %v1443 = vadd.f32 %v1430, 1.0
    %v1444 = vadd.f32 %v1432, 1.0
    %v1445 = vadd.f32 %v1434, 1.0
    %v1446 = vadd.f32 %v1436, 1.0
    %v1447 = vadd.f32 %v1438, 1.0
    %v1448 = vadd.f32 %v1440, 1.0
    %v1449 = vrcp.pop %v1441
    %v1450 = vmul.f32 1.0, %v1449
    %v1451 = vrcp.pop %v1442
    %v1452 = vmul.f32 1.0, %v1451
    %v1453 = vrcp.pop %v1443
    %v1454 = vmul.f32 1.0, %v1453
    %v1455 = vrcp.pop %v1444
    %v1456 = vmul.f32 1.0, %v1455
    %v1457 = vrcp.pop %v1445
    %v1458 = vmul.f32 1.0, %v1457
    %v1459 = vrcp.pop %v1446
    %v1460 = vmul.f32 1.0, %v1459
    %v1461 = vrcp.pop %v1447
    %v1462 = vmul.f32 1.0, %v1461
    %v1463 = vrcp.pop %v1448
    %v1464 = vmul.f32 1.0, %v1463
    %1466 = vset.pattern.permute.xlu0 0
    %1467 = vperm.xlu0 %1466, %v1450
    %v1468 = vpop.permute.xlu0 %1467
    %1471 = vset.pattern.permute.xlu0 0
    %1472 = vperm.xlu0 %1471, %v1452
    %v1473 = vpop.permute.xlu0 %1472
    %1476 = vset.pattern.permute.xlu0 0
    %1477 = vperm.xlu0 %1476, %v1454
    %v1478 = vpop.permute.xlu0 %1477
    %1481 = vset.pattern.permute.xlu0 0
    %1482 = vperm.xlu0 %1481, %v1456
    %v1483 = vpop.permute.xlu0 %1482
    %1486 = vset.pattern.permute.xlu0 0
    %1487 = vperm.xlu0 %1486, %v1458
    %v1488 = vpop.permute.xlu0 %1487
    %1491 = vset.pattern.permute.xlu0 0
    %1492 = vperm.xlu0 %1491, %v1460
    %v1493 = vpop.permute.xlu0 %1492
    %1496 = vset.pattern.permute.xlu0 0
    %1497 = vperm.xlu0 %1496, %v1462
    %v1498 = vpop.permute.xlu0 %1497
    %1501 = vset.pattern.permute.xlu0 0
    %1502 = vperm.xlu0 %1501, %v1464
    %v1503 = vpop.permute.xlu0 %1502
    %v1505 = vmul.f32 %v35, %v1468
    %v1506 = vmul.f32 %v36, %v1468
    %v1507 = vmul.f32 %v37, %v1473
    %v1508 = vmul.f32 %v38, %v1473
    %v1509 = vmul.f32 %v39, %v1478
    %v1510 = vmul.f32 %v40, %v1478
    %v1511 = vmul.f32 %v41, %v1483
    %v1512 = vmul.f32 %v42, %v1483
    %v1513 = vmul.f32 %v43, %v1488
    %v1514 = vmul.f32 %v44, %v1488
    %v1515 = vmul.f32 %v45, %v1493
    %v1516 = vmul.f32 %v46, %v1493
    %v1517 = vmul.f32 %v47, %v1498
    %v1518 = vmul.f32 %v48, %v1498
    %v1519 = vmul.f32 %v49, %v1503
    %v1520 = vmul.f32 %v50, %v1503
    %1521 = vst [vmem:[#allocation5] sm:$0xff] %v1505
    %1522 = vst [vmem:[#allocation5 + $0x8] sm:$0xff] %v1506
    %1523 = vst [vmem:[#allocation5 + $0x10] sm:$0xff] %v1507
    %1524 = vst [vmem:[#allocation5 + $0x18] sm:$0xff] %v1508
    %1525 = vst [vmem:[#allocation5 + $0x20] sm:$0xff] %v1509
    %1526 = vst [vmem:[#allocation5 + $0x28] sm:$0xff] %v1510
    %1527 = vst [vmem:[#allocation5 + $0x30] sm:$0xff] %v1511
    %1528 = vst [vmem:[#allocation5 + $0x38] sm:$0xff] %v1512
    %1529 = vst [vmem:[#allocation5 + $0x40] sm:$0xff] %v1513
    %1530 = vst [vmem:[#allocation5 + $0x48] sm:$0xff] %v1514
    %1531 = vst [vmem:[#allocation5 + $0x50] sm:$0xff] %v1515
    %1532 = vst [vmem:[#allocation5 + $0x58] sm:$0xff] %v1516
    %1533 = vst [vmem:[#allocation5 + $0x60] sm:$0xff] %v1517
    %1534 = vst [vmem:[#allocation5 + $0x68] sm:$0xff] %v1518
    %1535 = vst [vmem:[#allocation5 + $0x70] sm:$0xff] %v1519
    %1536 = vst [vmem:[#allocation5 + $0x78] sm:$0xff] %v1520
    // Predicated region
    $region26: #{tpu_custom_call.1} parent=1 // pred_check
      _
    $region27: #{tpu_custom_call.1} parent=1 // pred_check_branch
      %1538 = sbr.rel (0) target = $region29
    $region28: #{tpu_custom_call.1} parent=1 // pred_region
      %s1540 = ssub.s32 2048, 2048
      %1541 = vsyncadd [#allocation4], %s1540
      %s1542 = sshll.u32 [#allocation5], 4
      %s1543 = int_to_ptr.vmem [resolvable:$true] %s1542
      %1548 = dma.vmem_to_hbm [thread:$0]  %s1543, 2048, %s5, [#allocation4], 256, 256, 16
    $region29: #{tpu_custom_call.1} parent=1 // pred_fallthru
      _
    // Predicated region
    $region30: #{tpu_custom_call.1} parent=1 // pred_check
      _
    $region31: #{tpu_custom_call.1} parent=1 // pred_check_branch
      %1550 = sbr.rel (0) target = $region33
    $region32: #{tpu_custom_call.1} parent=1 // pred_region
      %1551 = dma.done [#allocation4], 2048
    $region33: #{tpu_custom_call.1} parent=1 // pred_fallthru
      _
    %1552 = vsyncpa [#allocation3], 1
    %1553 = vsyncpa [#allocation4], 1

</llo_original>
